<compile_context>
chip_gen: v7x
topology: tpu7x:2x2x1
jax: 0.10.0
libtpu: 0.0.40
codegen_flags: <defaults>
</compile_context>

<pallas_src>
import functools

import jax
import jax.numpy as jnp
from jax import lax
from jax.experimental import pallas as pl
from jax.experimental.pallas import tpu as pltpu


def _coral_loss_kernel(logits_ref, levels_ref, w_ref, out_ref, acc_ref,
                       *, n_rows, tile_rows, inv_divisor):
    i = pl.program_id(0)

    @pl.when(i == 0)
    def _init():
        acc_ref[...] = jnp.zeros_like(acc_ref)

    x = logits_ref[...].astype(jnp.float32)        # (TB, K-1)
    lv = levels_ref[...].astype(jnp.float32)       # (TB, K-1)
    w = w_ref[...].astype(jnp.float32)             # (1, K-1), broadcasts over rows

    # Numerically stable log-sigmoid: min(x, 0) - log1p(exp(-|x|))  (exp/log on EUP).
    log_sig = jnp.minimum(x, 0.0) - jnp.log1p(jnp.exp(-jnp.abs(x)))
    term1 = (log_sig * lv + (log_sig - x) * (1.0 - lv)) * w

    # Mask rows of a partial last tile (the block may read past the end of the array).
    row = i * tile_rows + lax.broadcasted_iota(jnp.int32, term1.shape, 0)
    term1 = jnp.where(row < n_rows, term1, 0.0)

    acc_ref[...] += jnp.sum(term1, axis=(0, 1), keepdims=True)

    @pl.when(i == pl.num_programs(0) - 1)
    def _finalize():
        # val = -sum(term1, dim=1); mean/sum over rows folds into one scalar.
        out_ref[...] = (-acc_ref[...] * inv_divisor).astype(out_ref.dtype)


def coral_loss(logits, levels, importance_weights=None, reduction="mean", *, tile_rows=None):
    """CORAL loss. logits/levels: (N, num_classes - 1). Returns a scalar."""
    if logits.shape != levels.shape:
        raise ValueError(
            "Please ensure that logits (%s) has the same shape as levels (%s)."
            % (logits.shape, levels.shape))
    n, km1 = logits.shape

    if importance_weights is None:
        # None has exactly the same effect as uniform ones (see reference docstring).
        w = jnp.ones((1, km1), dtype=jnp.float32)
    else:
        w = jnp.asarray(importance_weights, dtype=jnp.float32).reshape(1, km1)

    if reduction == "mean":
        inv_divisor = 1.0 / float(n)
    elif reduction == "sum":
        inv_divisor = 1.0
    else:
        # TODO(synk): reduction=None (per-row (N,) output) not implemented; the
        # module's default 'mean' and 'sum' paths are covered.
        raise NotImplementedError("reduction must be 'mean' or 'sum' for the Pallas kernel")

    # Row-tile choice: whole batch if it is small (block == full dim is always legal),
    # otherwise a multiple-of-8 tile that amortizes per-grid-step overhead.
    if tile_rows is None:
        tile_rows = n if n <= 256 else 256
    if tile_rows != n:
        tile_rows = max(8, (tile_rows // 8) * 8)
    grid = (pl.cdiv(n, tile_rows),)

    kernel = functools.partial(
        _coral_loss_kernel, n_rows=n, tile_rows=tile_rows, inv_divisor=inv_divisor)

    out = pl.pallas_call(
        kernel,
        out_shape=jax.ShapeDtypeStruct((1, 1), jnp.float32),
        grid=grid,
        in_specs=[
            pl.BlockSpec((tile_rows, km1), lambda i: (i, 0)),   # logits tile (pipelined)
            pl.BlockSpec((tile_rows, km1), lambda i: (i, 0)),   # levels tile (pipelined)
            pl.BlockSpec((1, km1), lambda i: (0, 0)),           # weights: DMA once, resident
        ],
        out_specs=pl.BlockSpec((1, 1), lambda i: (0, 0)),       # resident scalar output
        scratch_shapes=[pltpu.VMEM((1, 1), jnp.float32)],       # f32 accumulator
        compiler_params=pltpu.CompilerParams(
            dimension_semantics=("arbitrary",),                 # grid axis carries reduction
        ),
    )(logits, levels, w)
    return out[0, 0]


if __name__ == "__main__":
    # 1) Exact example from the coral_pytorch docstring: expected loss ~= 0.6920.
    levels_doc = jnp.array([[1., 1., 0., 0.],
                            [1., 0., 0., 0.],
                            [1., 1., 1., 1.]], dtype=jnp.float32)
    logits_doc = jnp.array([[2.1, 1.8, -2.1, -1.8],
                            [1.9, -1., -1.5, -1.3],
                            [1.9, 1.8, 1.7, 1.6]], dtype=jnp.float32)
    out_doc = jax.block_until_ready(coral_loss(logits_doc, levels_doc))
    assert jnp.allclose(out_doc, 0.6920, atol=1e-3), out_doc

    # 2) Larger deterministic case exercising the batch grid (2 steps), a masked
    #    partial tile, importance weights, and both reductions vs a JAX reference.
    N, Km1 = 13, 4
    key = jax.random.PRNGKey(0)
    k1, k2, k3 = jax.random.split(key, 3)
    lg = jax.random.normal(k1, (N, Km1), dtype=jnp.float32) * 2.0
    lv = (jax.random.uniform(k2, (N, Km1)) > 0.5).astype(jnp.float32)
    iw = jax.random.uniform(k3, (Km1,), dtype=jnp.float32) + 0.5

    def ref_coral_loss(logits, levels, w, reduction):
        ls = jax.nn.log_sigmoid(logits)
        t = ls * levels + (ls - logits) * (1.0 - levels)
        if w is not None:
            t = t * w.reshape(1, -1)
        val = -jnp.sum(t, axis=1)
        return jnp.mean(val) if reduction == "mean" else jnp.sum(val)

    for red in ("mean", "sum"):
        got = jax.block_until_ready(coral_loss(lg, lv, iw, reduction=red, tile_rows=8))
        want = ref_coral_loss(lg, lv, iw, red)
        assert jnp.allclose(got, want, atol=1e-5, rtol=1e-5), (red, got, want)

    # No importance weights (None path).
    got = jax.block_until_ready(coral_loss(lg, lv, tile_rows=8))
    want = ref_coral_loss(lg, lv, None, "mean")
    assert jnp.allclose(got, want, atol=1e-5, rtol=1e-5), (got, want)

    print("KERNEL_OK")
</pallas_src>

<mosaic_0001>
module attributes {stable_mosaic.version = 11 : i64} {
  func.func @_coral_loss_kernel(%arg0: i32, %arg1: memref<3x4xf32, #tpu.memory_space<vmem>>, %arg2: memref<3x4xf32, #tpu.memory_space<vmem>>, %arg3: memref<1x4xf32, #tpu.memory_space<vmem>>, %arg4: memref<1x1xf32, #tpu.memory_space<vmem>>, %arg5: memref<1x1xf32, #tpu.memory_space<vmem>>) attributes {dimension_semantics = [#tpu.dimension_semantics<arbitrary>], iteration_bounds = array<i64: 1>, scalar_prefetch = 0 : i64, scratch_operands = 1 : i64, tpu.core_type = #tpu.core_type<tc>, window_params = [{transform_indices = @transform_0, window_bounds = array<i64: 3, 4>}, {transform_indices = @transform_1, window_bounds = array<i64: 3, 4>}, {pipeline_mode = #tpu.pipeline_mode<synchronous>, transform_indices = @transform_2, window_bounds = array<i64: 1, 4>}, {pipeline_mode = #tpu.pipeline_mode<synchronous>, transform_indices = @transform_3, window_bounds = array<i64: 1, 1>}]} {
    %c0_i32 = arith.constant 0 : i32
    %0 = arith.cmpi eq, %arg0, %c0_i32 : i32
    %1 = arith.extui %0 : i1 to i32
    %c0_i32_0 = arith.constant 0 : i32
    %2 = arith.cmpi ne, %1, %c0_i32_0 : i32
    scf.if %2 {
      %cst_17 = arith.constant 0.000000e+00 : f32
      %41 = vector.broadcast %cst_17 : f32 to vector<1x1xf32>
      %c0_18 = arith.constant 0 : index
      %c0_19 = arith.constant 0 : index
      %42 = vector.load %arg5[%c0_18, %c0_19] : memref<1x1xf32, #tpu.memory_space<vmem>>, vector<1x1xf32>
      tpu.vector_store %arg5[%c0_18, %c0_19], %41 {strides = array<i32>} : memref<1x1xf32, #tpu.memory_space<vmem>>, vector<1x1xf32>,
    } else {
    }
    %c0 = arith.constant 0 : index
    %c0_1 = arith.constant 0 : index
    %3 = vector.load %arg1[%c0, %c0_1] : memref<3x4xf32, #tpu.memory_space<vmem>>, vector<3x4xf32>
    %c0_2 = arith.constant 0 : index
    %c0_3 = arith.constant 0 : index
    %4 = vector.load %arg2[%c0_2, %c0_3] : memref<3x4xf32, #tpu.memory_space<vmem>>, vector<3x4xf32>
    %c0_4 = arith.constant 0 : index
    %c0_5 = arith.constant 0 : index
    %5 = vector.load %arg3[%c0_4, %c0_5] : memref<1x4xf32, #tpu.memory_space<vmem>>, vector<1x4xf32>
    %cst = arith.constant 0.000000e+00 : f32
    %6 = vector.broadcast %cst : f32 to vector<3x4xf32>
    %7 = arith.minimumf %3, %6 : vector<3x4xf32>
    %8 = math.absf %3 : vector<3x4xf32>
    %cst_6 = arith.constant 0.000000e+00 : f32
    %9 = vector.broadcast %cst_6 : f32 to vector<3x4xf32>
    %10 = arith.subf %9, %8 : vector<3x4xf32>
    %11 = math.exp %10 : vector<3x4xf32>
    %12 = math.log1p %11 : vector<3x4xf32>
    %13 = arith.subf %7, %12 : vector<3x4xf32>
    %14 = arith.mulf %13, %4 : vector<3x4xf32>
    %15 = arith.subf %13, %3 : vector<3x4xf32>
    %cst_7 = arith.constant 1.000000e+00 : f32
    %16 = vector.broadcast %cst_7 : f32 to vector<3x4xf32>
    %17 = arith.subf %16, %4 : vector<3x4xf32>
    %18 = arith.mulf %15, %17 : vector<3x4xf32>
    %19 = arith.addf %14, %18 : vector<3x4xf32>
    %20 = vector.broadcast %5 : vector<1x4xf32> to vector<3x4xf32>
    %21 = arith.mulf %19, %20 : vector<3x4xf32>
    %c3_i32 = arith.constant 3 : i32
    %22 = arith.muli %arg0, %c3_i32 : i32
    %23 = tpu.iota {dimensions = array<i32: 0>} : vector<3x4xi32>
    %24 = vector.broadcast %22 : i32 to vector<3x4xi32>
    %25 = arith.addi %24, %23 : vector<3x4xi32>
    %c3_i32_8 = arith.constant 3 : i32
    %26 = vector.broadcast %c3_i32_8 : i32 to vector<3x4xi32>
    %27 = arith.cmpi slt, %25, %26 : vector<3x4xi32>
    %cst_9 = arith.constant 0.000000e+00 : f32
    %28 = vector.broadcast %cst_9 : f32 to vector<3x4xf32>
    %29 = arith.select %27, %21, %28 : vector<3x4xi1>, vector<3x4xf32>
    %c0_10 = arith.constant 0 : index
    %c0_11 = arith.constant 0 : index
    %30 = vector.load %arg5[%c0_10, %c0_11] : memref<1x1xf32, #tpu.memory_space<vmem>>, vector<1x1xf32>
    %31 = vector.shape_cast %29 : vector<3x4xf32> to vector<1x3x4xf32>
    %cst_12 = arith.constant dense<0.000000e+00> : vector<1xf32>
    %32 = vector.multi_reduction <add>, %31, %cst_12 [1, 2] : vector<1x3x4xf32> to vector<1xf32>
    %33 = vector.shape_cast %32 : vector<1xf32> to vector<1x1x1xf32>
    %34 = vector.extract %33[0, 0, 0] : f32 from vector<1x1x1xf32>
    %35 = vector.broadcast %34 : f32 to vector<1x1xf32>
    %36 = arith.addf %30, %35 : vector<1x1xf32>
    %c0_13 = arith.constant 0 : index
    %c0_14 = arith.constant 0 : index
    %37 = vector.load %arg5[%c0_13, %c0_14] : memref<1x1xf32, #tpu.memory_space<vmem>>, vector<1x1xf32>
    tpu.vector_store %arg5[%c0_13, %c0_14], %36 {strides = array<i32>} : memref<1x1xf32, #tpu.memory_space<vmem>>, vector<1x1xf32>,
    %c0_i32_15 = arith.constant 0 : i32
    %38 = arith.cmpi eq, %arg0, %c0_i32_15 : i32
    %39 = arith.extui %38 : i1 to i32
    %c0_i32_16 = arith.constant 0 : i32
    %40 = arith.cmpi ne, %39, %c0_i32_16 : i32
    scf.if %40 {
      %c0_17 = arith.constant 0 : index
      %c0_18 = arith.constant 0 : index
      %41 = vector.load %arg5[%c0_17, %c0_18] : memref<1x1xf32, #tpu.memory_space<vmem>>, vector<1x1xf32>
      %cst_19 = arith.constant 0.000000e+00 : f32
      %42 = vector.broadcast %cst_19 : f32 to vector<1x1xf32>
      %43 = arith.subf %42, %41 : vector<1x1xf32>
      %cst_20 = arith.constant 0.333333343 : f32
      %44 = vector.broadcast %cst_20 : f32 to vector<1x1xf32>
      %45 = arith.mulf %43, %44 : vector<1x1xf32>
      %c0_21 = arith.constant 0 : index
      %c0_22 = arith.constant 0 : index
      %46 = vector.load %arg4[%c0_21, %c0_22] : memref<1x1xf32, #tpu.memory_space<vmem>>, vector<1x1xf32>
      tpu.vector_store %arg4[%c0_21, %c0_22], %45 {strides = array<i32>} : memref<1x1xf32, #tpu.memory_space<vmem>>, vector<1x1xf32>,
    } else {
    }
    return
  }
  func.func @transform_0(%arg0: i32) -> (i32, i32) {
    %c0_i32 = arith.constant 0 : i32
    %c0_i32_0 = arith.constant 0 : i32
    return %arg0, %c0_i32 : i32, i32
  }
  func.func @transform_1(%arg0: i32) -> (i32, i32) {
    %c0_i32 = arith.constant 0 : i32
    %c0_i32_0 = arith.constant 0 : i32
    return %arg0, %c0_i32 : i32, i32
  }
  func.func @transform_2(%arg0: i32) -> (i32, i32) {
    %c0_i32 = arith.constant 0 : i32
    %c0_i32_0 = arith.constant 0 : i32
    %c0_i32_1 = arith.constant 0 : i32
    return %c0_i32, %c0_i32_0 : i32, i32
  }
  func.func @transform_3(%arg0: i32) -> (i32, i32) {
    %c0_i32 = arith.constant 0 : i32
    %c0_i32_0 = arith.constant 0 : i32
    %c0_i32_1 = arith.constant 0 : i32
    return %c0_i32, %c0_i32_0 : i32, i32
  }
}

</mosaic_0001>

<llo_original>
// kernel: tpu_custom_call.1
$region0: #{tpu_custom_call.1}
  #allocation0 [shape = 'u32[]', space=smem, size = 0x4, offset = 0x4, fixed_abs, tag = 'smem constant byte address 0x4 - core index']
  #allocation1 [shape = 'u32[144,128]{1,0:T(1,128)}', space=vmem, size = 0x12000, scoped, tag = 'internal scratch']
  #allocation2 [shape = 'f32[1,1]{1,0:T(1,128)}', space=vmem, size = 0x200, scoped, tag = 'scratch operand']
  %s0 = inlined_call_operand.hbm [shape: f32[3,4], index: 0, kind: input, shape index: {}]
  %s1 = inlined_call_operand.hbm [shape: f32[3,4], index: 1, kind: input, shape index: {}]
  %s2 = inlined_call_operand.vmem [shape: f32[1,4], index: 2, kind: input, shape index: {}]
  %s3 = inlined_call_operand.hbm [shape: f32[1,1], index: 3, kind: output, shape index: {}]
  %s4 = sld [smem:[#allocation0]]
  $region38: #{tpu_custom_call.1} parent=0
    _
  %s6 = ssub.s32 1, %s4
  %s7 = scalar_select 0, %s6, %s4
  $region1: #{tpu_custom_call.1} parent=0
    #allocation3 [shape = 'u8[2048]{0}', space=vmem, size = 0x800, scoped, tag = 'input window, operand 0, single buffered']
    #allocation4 [shape = 's32[1]{0}', space=sflag, size = 0x4, scoped, tag = 'scoped memory for tpu_custom_call.1']
    #allocation5 [shape = 's32[1]{0}', space=sflag, size = 0x4, scoped, tag = 'scoped memory for tpu_custom_call.1']
    #allocation6 [shape = 'u8[2048]{0}', space=vmem, size = 0x800, scoped, tag = 'input window, operand 1, single buffered']
    #allocation7 [shape = 's32[1]{0}', space=sflag, size = 0x4, scoped, tag = 'scoped memory for tpu_custom_call.1']
    #allocation8 [shape = 'u8[512]{0}', space=vmem, size = 0x400, scoped, tag = 'output window, operand 0, single buffered']
    %8 = vsyncpa [#allocation4], 0
    %9 = vsyncpa [#allocation7], 0
    %10 = vsyncpa [#allocation5], 0
    // Predicated region
    $region2: #{tpu_custom_call.1} parent=1 // pred_check
      _
    $region3: #{tpu_custom_call.1} parent=1 // pred_check_branch
      %12 = sbr.rel (0) target = $region5
    $region4: #{tpu_custom_call.1} parent=1 // pred_region
      %s14 = ssub.s32 64, 64
      %15 = vsyncadd [#allocation4], %s14
      %s17 = sshll.u32 [#allocation3], 4
      %s18 = int_to_ptr.vmem [resolvable:$true] %s17
      %20 = dma.hbm_to_vmem [thread:$0]  %s0, 64, %s18, [#allocation4]
    $region5: #{tpu_custom_call.1} parent=1 // pred_fallthru
      _
    // Predicated region
    $region6: #{tpu_custom_call.1} parent=1 // pred_check
      _
    $region7: #{tpu_custom_call.1} parent=1 // pred_check_branch
      %22 = sbr.rel (0) target = $region9
    $region8: #{tpu_custom_call.1} parent=1 // pred_region
      %s24 = ssub.s32 64, 64
      %25 = vsyncadd [#allocation7], %s24
      %s27 = sshll.u32 [#allocation6], 4
      %s28 = int_to_ptr.vmem [resolvable:$true] %s27
      %30 = dma.hbm_to_vmem [thread:$0]  %s1, 64, %s28, [#allocation7]
    $region9: #{tpu_custom_call.1} parent=1 // pred_fallthru
      _
    // Predicated region
    $region10: #{tpu_custom_call.1} parent=1 // pred_check
      _
    $region11: #{tpu_custom_call.1} parent=1 // pred_check_branch
      %32 = sbr.rel (0) target = $region13
    $region12: #{tpu_custom_call.1} parent=1 // pred_region
      _
    $region13: #{tpu_custom_call.1} parent=1 // pred_fallthru
      _
    // Predicated region
    $region14: #{tpu_custom_call.1} parent=1 // pred_check
      _
    $region15: #{tpu_custom_call.1} parent=1 // pred_check_branch
      %34 = sbr.rel (0) target = $region17
    $region16: #{tpu_custom_call.1} parent=1 // pred_region
      %35 = dma.done [#allocation4], 64
    $region17: #{tpu_custom_call.1} parent=1 // pred_fallthru
      _
    // Predicated region
    $region18: #{tpu_custom_call.1} parent=1 // pred_check
      _
    $region19: #{tpu_custom_call.1} parent=1 // pred_check_branch
      %37 = sbr.rel (0) target = $region21
    $region20: #{tpu_custom_call.1} parent=1 // pred_region
      %38 = dma.done [#allocation7], 64
    $region21: #{tpu_custom_call.1} parent=1 // pred_fallthru
      _
    %p39 = scmp.eq.s32.totalorder 0, 0
    // Predicated region
    $region22: #{tpu_custom_call.1} parent=1 // pred_check
      %p40 = pneg %p39
    $region23: #{tpu_custom_call.1} parent=1 // pred_check_branch
      %42 = sbr.rel (%p40) target = $region25
    $region24: #{tpu_custom_call.1} parent=1 // pred_region
      %vm43 = vcmask 0
      %44 = vst.msk [vmem:[#allocation2] sm:$0x1] %vm43, 0.0
    $region25: #{tpu_custom_call.1} parent=1 // pred_fallthru
      _
    %v45 = vld [vmem:[#allocation3] sm:$0x7]
    %v46 = vld [vmem:[#allocation6] sm:$0x7]
    %v47 = vld [vmem:[%s2] sm:$0x1]
    %v48 = vmin.f32 %v45, 0.0
    %v49 = vand.u32 2147483647, %v45
    %v50 = vsub.f32 0.0, %v49
    %v51 = vmul.f32 %v50, 1.442695
    %v52 = vpow.pop %v51
    %v53 = vadd.f32 %v52, 1.0
    %v54 = vlog2.pop %v53
    %v55 = vmul.f32 %v54, 0.6931472
    %v56 = vmul.f32 -0.5, %v52
    %v57 = vadd.f32 %v56, 1.0
    %v58 = vmul.f32 %v57, %v52
    %v59 = vand.u32 2147483647, %v52
    %vm60 = vcmp.lt.f32.partialorder %v59, 0.0004427343
    %v61 = vsel %vm60, %v58, %v55
    %v62 = vsub.f32 %v48, %v61
    %v63 = vmul.f32 %v62, %v46
    %v64 = vsub.f32 %v62, %v45
    %v65 = vsub.f32 1.0, %v46
    %v66 = vmul.f32 %v64, %v65
    %v67 = vadd.f32 %v63, %v66
    %v69 = vlaneseq
    %v70 = vshrl.u32 %v69, 7
    %v71 = vsub.s32 0, %v70
    %v72 = vrot.slane %v47, %v71
    %v74 = vmul.f32 %v67, %v72
    %s75 = smul.u32 0, 3
    %v76 = vlaneseq
    %v77 = vshrl.u32 %v76, 7
    %v78 = vstv %s75
    %v79 = vadd.s32 %v78, %v77
    %vm80 = vcmp.lt.s32.totalorder %v79, 3
    %v81 = vsel %vm80, %v74, 0.0
    %v82 = vld [vmem:[#allocation2] sm:$0x1]
    %vm83 = vcmask 26624
    %v84 = vsel %vm83, %v81, 0.0
    %85 = vadd.xlane.f32.xlu0 %v84
    %v86 = vpop.xlane.xlu0 %85
    %v87 = vrot.slane %v86, 4
    %v88 = vadd.f32 %v86, %v87
    %v89 = vrot.slane %v88, 2
    %v90 = vadd.f32 %v88, %v89
    %v91 = vrot.slane %v90, 1
    %v92 = vadd.f32 %v90, %v91
    %s93 = vtos %v92
    %v94 = vstv %s93
    %v95 = vadd.f32 %v82, %v94
    %vm96 = vcmask 0
    %97 = vst.msk [vmem:[#allocation2] sm:$0x1] %vm96, %v95
    // Predicated region
    $region26: #{tpu_custom_call.1} parent=1 // pred_check
      %p98 = pneg %p39
    $region27: #{tpu_custom_call.1} parent=1 // pred_check_branch
      %100 = sbr.rel (%p98) target = $region29
    $region28: #{tpu_custom_call.1} parent=1 // pred_region
      %v101 = vld [vmem:[#allocation2] sm:$0x1]
      %v102 = vsub.f32 0.0, %v101
      %v103 = vmul.f32 %v102, 0.33333334
      %104 = vst.msk [vmem:[#allocation8] sm:$0x1] %vm96, %v103
    $region29: #{tpu_custom_call.1} parent=1 // pred_fallthru
      _
    // Predicated region
    $region30: #{tpu_custom_call.1} parent=1 // pred_check
      _
    $region31: #{tpu_custom_call.1} parent=1 // pred_check_branch
      %106 = sbr.rel (0) target = $region33
    $region32: #{tpu_custom_call.1} parent=1 // pred_region
      %s108 = ssub.s32 16, 16
      %109 = vsyncadd [#allocation5], %s108
      %s111 = sshll.u32 [#allocation8], 4
      %s112 = int_to_ptr.vmem [resolvable:$true] %s111
      %114 = dma.vmem_to_hbm [thread:$0]  %s112, 16, %s3, [#allocation5]
    $region33: #{tpu_custom_call.1} parent=1 // pred_fallthru
      _
    // Predicated region
    $region34: #{tpu_custom_call.1} parent=1 // pred_check
      _
    $region35: #{tpu_custom_call.1} parent=1 // pred_check_branch
      %116 = sbr.rel (0) target = $region37
    $region36: #{tpu_custom_call.1} parent=1 // pred_region
      %117 = dma.done [#allocation5], 16
    $region37: #{tpu_custom_call.1} parent=1 // pred_fallthru
      _
    %118 = vsyncpa [#allocation4], 1
    %119 = vsyncpa [#allocation7], 1
    %120 = vsyncpa [#allocation5], 1

</llo_original>
